<compile_context>
chip_gen: v6e
topology: v6e:2x2x1
jax: 0.10.0
libtpu: 0.0.40
codegen_flags: <defaults>
</compile_context>

<pallas_src>
import jax
import jax.numpy as jnp
from jax.experimental import pallas as pl
from jax.experimental.pallas import tpu as pltpu


PACK = 8  # x rows packed per VMEM sublane row (free row-major reshape)


def fused_affine_kernel(w_ref, b_ref, x_ref, o_ref):
    # w_ref: (PACK*IN, PACK*OUT) = (40, 16)  block-diagonal fused weight, resident
    # b_ref: (1, PACK*OUT)       = (1, 16)   fused bias (replicated), resident
    # x_ref: (tp, PACK*IN)                   batch tile, 8 x-rows per sublane row
    # o_ref: (tp, PACK*OUT)                  packed output tile
    y = jnp.dot(x_ref[...], w_ref[...], preferred_element_type=jnp.float32)
    o_ref[...] = (y + b_ref[...]).astype(o_ref.dtype)  # bias folded into store path


def _pallas_fused_affine(x, w_fused, b_fused, *, tile_rows):
    """Pallas streaming path. Requires x.shape[0] % PACK == 0."""
    B, in_dim = x.shape
    out_dim = w_fused.shape[1]
    rows_p = B // PACK

    # Free (metadata-only) reshapes of contiguous row-major arrays — no HBM relayout.
    xp = x.reshape(rows_p, PACK * in_dim)                              # (B/8, 40)
    # Block-diagonal expansion so one matmul handles PACK consecutive x-rows;
    # bias replicated to match the packed output layout [y0c0, y0c1, y1c0, ...].
    w_big = jnp.kron(jnp.eye(PACK, dtype=w_fused.dtype), w_fused)      # (40, 16)
    b_big = jnp.tile(b_fused, (1, PACK))                               # (1, 16)

    # Packed-row tile: as large as the VMEM budget allows, clamped to the batch.
    tp_cap = max(8, ((tile_rows // PACK) // 8) * 8)
    if tp_cap >= rows_p:
        tp, num_tiles = rows_p, 1        # single full-extent block (any size legal)
    else:
        tp, num_tiles = tp_cap, pl.cdiv(rows_p, tp_cap)
        # Ragged last block is safe: rows are independent, OOB writes are masked.

    out_p = pl.pallas_call(
        fused_affine_kernel,
        out_shape=jax.ShapeDtypeStruct((rows_p, PACK * out_dim), jnp.float32),
        grid_spec=pltpu.PrefetchScalarGridSpec(
            num_scalar_prefetch=0,
            grid=(num_tiles,),
            in_specs=[
                pl.BlockSpec((PACK * in_dim, PACK * out_dim), lambda i: (0, 0)),  # resident
                pl.BlockSpec((1, PACK * out_dim), lambda i: (0, 0)),              # resident
                pl.BlockSpec((tp, PACK * in_dim), lambda i: (i, 0)),              # x tile
            ],
            out_specs=pl.BlockSpec((tp, PACK * out_dim), lambda i: (i, 0)),
        ),
        compiler_params=pltpu.CompilerParams(
            dimension_semantics=("parallel",),   # batch tiles are independent
            vmem_limit_bytes=32 * 1024 * 1024,   # fits v5e/v6e and v7x's 64 MiB TC
        ),
    )(w_big, b_big, xp)

    return out_p.reshape(B, out_dim)             # free reshape back to (B, 2)


def mymodel_forward(x, w1, b1, w2, b2, *, tile_rows=65536, min_pallas_rows=8192):
    """Forward pass of MyModel (fc2(fc1(x))), fused into one affine map.

    x: (B, 5) f32; weights stored as (in, out) so x @ W matches nn.Linear.
    """
    w_fused = w1 @ w2            # (5, 2)
    b_fused = b1 @ w2 + b2       # (1, 2)
    B = x.shape[0]
    if B < min_pallas_rows or (B % PACK) != 0:
        # Small or ragged batch: one fused XLA dot does exactly one read of x and
        # one write of y — a kernel launch cannot beat that here.
        return x @ w_fused + b_fused
    return _pallas_fused_affine(x, w_fused, b_fused, tile_rows=tile_rows)


def init_params(key):
    # Deterministic init mimicking PyTorch nn.Linear default:
    # uniform(-1/sqrt(fan_in), 1/sqrt(fan_in)) for both weight and bias.
    k1, k2, k3, k4 = jax.random.split(key, 4)
    bound1 = 1.0 / (5 ** 0.5)
    bound2 = 1.0 / (10 ** 0.5)
    # Stored as (in, out) so x @ W matches PyTorch's x @ W.T with W = (out, in).
    w1 = jax.random.uniform(k1, (5, 10), jnp.float32, -bound1, bound1)
    b1 = jax.random.uniform(k2, (1, 10), jnp.float32, -bound1, bound1)
    w2 = jax.random.uniform(k3, (10, 2), jnp.float32, -bound2, bound2)
    b2 = jax.random.uniform(k4, (1, 2), jnp.float32, -bound2, bound2)
    return w1, b1, w2, b2


if __name__ == "__main__":
    key = jax.random.PRNGKey(0)
    kx, kp = jax.random.split(key)

    # Small demo batch, multiple of PACK: 2056 rows -> 257 packed rows.
    batch = 2056
    x = jax.random.normal(kx, (batch, 5), jnp.float32)
    w1, b1, w2, b2 = init_params(kp)

    # Pure-JAX reference of the original (unfused) two-layer forward.
    ref = (x @ w1 + b1) @ w2 + b2

    # 1) Pallas path with a small tile: 5 grid steps incl. a ragged last block.
    out = mymodel_forward(x, w1, b1, w2, b2, tile_rows=512, min_pallas_rows=0)
    jax.block_until_ready(out)
    assert out.shape == (batch, 2)
    assert jnp.allclose(out, ref, atol=1e-5, rtol=1e-5)

    # 2) Pallas path with the default (large) tile: clamps to one full block.
    out_big = mymodel_forward(x, w1, b1, w2, b2, min_pallas_rows=0)
    jax.block_until_ready(out_big)
    assert jnp.allclose(out_big, ref, atol=1e-5, rtol=1e-5)

    # 3) Default small-batch fallback (plain fused XLA dot).
    out_fb = mymodel_forward(x, w1, b1, w2, b2)
    jax.block_until_ready(out_fb)
    assert jnp.allclose(out_fb, ref, atol=1e-5, rtol=1e-5)

    print("KERNEL_OK")
</pallas_src>

<mosaic_0001>
module attributes {stable_mosaic.version = 11 : i64} {
  func.func @fused_affine_kernel(%arg0: i32, %arg1: memref<40x16xf32, #tpu.memory_space<vmem>>, %arg2: memref<1x16xf32, #tpu.memory_space<vmem>>, %arg3: memref<64x40xf32, #tpu.memory_space<vmem>>, %arg4: memref<64x16xf32, #tpu.memory_space<vmem>>) attributes {dimension_semantics = [#tpu.dimension_semantics<parallel>], iteration_bounds = array<i64: 5>, scalar_prefetch = 0 : i64, scratch_operands = 0 : i64, tpu.core_type = #tpu.core_type<tc>, window_params = [{pipeline_mode = #tpu.pipeline_mode<synchronous>, transform_indices = @transform_0, window_bounds = array<i64: 40, 16>}, {pipeline_mode = #tpu.pipeline_mode<synchronous>, transform_indices = @transform_1, window_bounds = array<i64: 1, 16>}, {transform_indices = @transform_2, window_bounds = array<i64: 64, 40>}, {transform_indices = @transform_3, window_bounds = array<i64: 64, 16>}]} {
    %c0 = arith.constant 0 : index
    %c0_0 = arith.constant 0 : index
    %0 = vector.load %arg3[%c0, %c0_0] : memref<64x40xf32, #tpu.memory_space<vmem>>, vector<64x40xf32>
    %c0_1 = arith.constant 0 : index
    %c0_2 = arith.constant 0 : index
    %1 = vector.load %arg1[%c0_1, %c0_2] : memref<40x16xf32, #tpu.memory_space<vmem>>, vector<40x16xf32>
    %cst = arith.constant dense<0.000000e+00> : vector<64x16xf32>
    %2 = tpu.matmul %0, %1, %cst {dimension_numbers = #tpu.dot_dimension_numbers<[1], [0], [0], [1], [0, 0, 1, 1], [], []>} : vector<64x40xf32>, vector<40x16xf32>, vector<64x16xf32> -> vector<64x16xf32>
    %c0_3 = arith.constant 0 : index
    %c0_4 = arith.constant 0 : index
    %3 = vector.load %arg2[%c0_3, %c0_4] : memref<1x16xf32, #tpu.memory_space<vmem>>, vector<1x16xf32>
    %4 = vector.broadcast %3 : vector<1x16xf32> to vector<64x16xf32>
    %5 = arith.addf %2, %4 : vector<64x16xf32>
    %c0_5 = arith.constant 0 : index
    %c0_6 = arith.constant 0 : index
    %6 = vector.load %arg4[%c0_5, %c0_6] : memref<64x16xf32, #tpu.memory_space<vmem>>, vector<64x16xf32>
    tpu.vector_store %arg4[%c0_5, %c0_6], %5 {strides = array<i32>} : memref<64x16xf32, #tpu.memory_space<vmem>>, vector<64x16xf32>,
    return
  }
  func.func @transform_0(%arg0: i32) -> (i32, i32) {
    %c0_i32 = arith.constant 0 : i32
    %c0_i32_0 = arith.constant 0 : i32
    %c0_i32_1 = arith.constant 0 : i32
    return %c0_i32, %c0_i32_0 : i32, i32
  }
  func.func @transform_1(%arg0: i32) -> (i32, i32) {
    %c0_i32 = arith.constant 0 : i32
    %c0_i32_0 = arith.constant 0 : i32
    %c0_i32_1 = arith.constant 0 : i32
    return %c0_i32, %c0_i32_0 : i32, i32
  }
  func.func @transform_2(%arg0: i32) -> (i32, i32) {
    %c0_i32 = arith.constant 0 : i32
    %c0_i32_0 = arith.constant 0 : i32
    return %arg0, %c0_i32 : i32, i32
  }
  func.func @transform_3(%arg0: i32) -> (i32, i32) {
    %c0_i32 = arith.constant 0 : i32
    %c0_i32_0 = arith.constant 0 : i32
    return %arg0, %c0_i32 : i32, i32
  }
}

</mosaic_0001>

<llo_original>
// kernel: tpu_custom_call.1
$region0: #{tpu_custom_call.1}
  #allocation0 [shape = 'u32[]', space=smem, size = 0x4, offset = 0x4, fixed_abs, tag = 'smem constant byte address 0x4 - core index']
  #allocation1 [shape = 'u32[144,128]{1,0:T(1,128)}', space=vmem, size = 0x12000, scoped, tag = 'internal scratch']
  %s0 = inlined_call_operand.vmem [shape: f32[40,16], index: 0, kind: input, shape index: {}]
  %s1 = inlined_call_operand.vmem [shape: f32[1,16], index: 1, kind: input, shape index: {}]
  %s2 = inlined_call_operand.vmem [shape: f32[257,40], index: 2, kind: input, shape index: {}]
  %s3 = inlined_call_operand.vmem [shape: f32[257,16], index: 3, kind: output, shape index: {}]
  %s4 = sld [smem:[#allocation0]]
  $region93: #{tpu_custom_call.1} parent=0
    _
  %s6 = ssub.s32 1, %s4
  %s7 = scalar_select 0, %s6, %s4
  $region1: #{tpu_custom_call.1} parent=0
    #allocation2 [shape = 'u8[65536]{0}', space=vmem, size = 0x10000, scoped, tag = 'output window, operand 0']
    loop: start=0, step=1, limit=7
    $region2: #{tpu_custom_call.1} parent=1 // loop_pre_header
      _
    $region3: #{tpu_custom_call.1} parent=1 // loop_header
      %s9 = sphi 0, %s13
      %p10 = scmp.ge.s32.totalorder %s9, 7
      %s17 = sphi 0, %s17
      %s19 = sphi 0, %s17
      %s20 = sphi 0, %s19
      %s34 = sphi 0, %s20
      %s38 = sphi 0, %s38
      %s40 = sphi 0, %s38
      %s41 = sphi 0, %s40
      %s55 = sphi 0, %s41
      %s61 = sphi 0, %s63
      %s64 = sphi 0, %s61
      %s65 = sphi 0, %s64
      %s81 = sphi 0, %s65
      %s87 = sphi 0, %s89
      %s90 = sphi 0, %s87
      %s91 = sphi 0, %s90
      %s107 = sphi 0, %s91
    $region4: #{tpu_custom_call.1} parent=1 // loop_header_branch
      %12 = sbr.rel (%p10) target = $region8
    $region5: #{tpu_custom_call.1} parent=1 // loop_body
      %s14 = ssub.s32 %s9, 1
      %s15 = ssub.s32 %s9, 2
      %s16 = sadd.s32 %s9, 1
      %s18 = sadd.s32 %s17, 1
      %p21 = scmp.eq.s32.totalorder %s9, 4
      %p22 = scmp.ne.s32.totalorder %s17, %s19
      %p23 = scmp.eq.s32.totalorder %s9, 0
      %p24 = por %p22, %p23
      %p25 = scmp.ne.s32.totalorder %s17, %s19
      %p26 = scmp.eq.s32.totalorder %s14, 4
      %p27 = por %p25, %p26
      %p28 = scmp.ne.s32.totalorder %s19, %s20
      %p29 = scmp.eq.s32.totalorder %s14, 0
      %p30 = por %p28, %p29
      %p31 = scmp.ne.s32.totalorder %s19, %s20
      %p32 = scmp.eq.s32.totalorder %s15, 4
      %p33 = por %p31, %p32
      %p35 = scmp.ne.s32.totalorder %s20, %s34
      %p36 = scmp.eq.s32.totalorder %s15, 0
      %p37 = por %p35, %p36
      %s39 = sadd.s32 %s38, 1
      %p42 = scmp.eq.s32.totalorder %s9, 4
      %p43 = scmp.ne.s32.totalorder %s38, %s40
      %p44 = scmp.eq.s32.totalorder %s9, 0
      %p45 = por %p43, %p44
      %p46 = scmp.ne.s32.totalorder %s38, %s40
      %p47 = scmp.eq.s32.totalorder %s14, 4
      %p48 = por %p46, %p47
      %p49 = scmp.ne.s32.totalorder %s40, %s41
      %p50 = scmp.eq.s32.totalorder %s14, 0
      %p51 = por %p49, %p50
      %p52 = scmp.ne.s32.totalorder %s40, %s41
      %p53 = scmp.eq.s32.totalorder %s15, 4
      %p54 = por %p52, %p53
      %p56 = scmp.ne.s32.totalorder %s41, %s55
      %p57 = scmp.eq.s32.totalorder %s15, 0
      %p58 = por %p56, %p57
      %s59 = ssub.s32 %s9, %s16
      %p60 = scmp.eq.s32.totalorder %s59, 0
      %s62 = sadd.s32 %s61, 1
      %s63 = scalar_select %p60, %s61, %s62
      %p66 = pneg %p60
      %p67 = scmp.eq.s32.totalorder %s9, 4
      %p68 = por %p66, %p67
      %p69 = scmp.ne.s32.totalorder %s61, %s64
      %p70 = scmp.eq.s32.totalorder %s9, 0
      %p71 = por %p69, %p70
      %p72 = scmp.ne.s32.totalorder %s61, %s64
      %p73 = scmp.eq.s32.totalorder %s14, 4
      %p74 = por %p72, %p73
      %p75 = scmp.ne.s32.totalorder %s64, %s65
      %p76 = scmp.eq.s32.totalorder %s14, 0
      %p77 = por %p75, %p76
      %p78 = scmp.ne.s32.totalorder %s64, %s65
      %p79 = scmp.eq.s32.totalorder %s15, 4
      %p80 = por %p78, %p79
      %p82 = scmp.ne.s32.totalorder %s65, %s81
      %p83 = scmp.eq.s32.totalorder %s15, 0
      %p84 = por %p82, %p83
      %s85 = ssub.s32 %s9, %s16
      %p86 = scmp.eq.s32.totalorder %s85, 0
      %s88 = sadd.s32 %s87, 1
      %s89 = scalar_select %p86, %s87, %s88
      %p92 = pneg %p86
      %p93 = scmp.eq.s32.totalorder %s9, 4
      %p94 = por %p92, %p93
      %p95 = scmp.ne.s32.totalorder %s87, %s90
      %p96 = scmp.eq.s32.totalorder %s9, 0
      %p97 = por %p95, %p96
      %p98 = scmp.ne.s32.totalorder %s87, %s90
      %p99 = scmp.eq.s32.totalorder %s14, 4
      %p100 = por %p98, %p99
      %p101 = scmp.ne.s32.totalorder %s90, %s91
      %p102 = scmp.eq.s32.totalorder %s14, 0
      %p103 = por %p101, %p102
      %p104 = scmp.ne.s32.totalorder %s90, %s91
      %p105 = scmp.eq.s32.totalorder %s15, 4
      %p106 = por %p104, %p105
      %p108 = scmp.ne.s32.totalorder %s91, %s107
      %p109 = scmp.eq.s32.totalorder %s15, 0
      %p110 = por %p108, %p109
      %p111 = scmp.le.s32.totalorder 1, %s9
      %p112 = scmp.lt.s32.totalorder %s9, 6
      %p113 = pnand %p111, %p112
      %p114 = pneg %p113
      // Predicated region
      $region9: #{tpu_custom_call.1} parent=5 // pred_check
        _
      $region10: #{tpu_custom_call.1} parent=5 // pred_check_branch
        %116 = sbr.rel (%p113) target = $region12
      $region11: #{tpu_custom_call.1} parent=5 // pred_region
        %s117 = ssub.s32 %s9, 1
        // Predicated region
        $region13: #{tpu_custom_call.1} parent=11 // pred_check
          %p118 = pneg %p30
        $region14: #{tpu_custom_call.1} parent=11 // pred_check_branch
          %120 = sbr.rel (%p118) target = $region16
        $region15: #{tpu_custom_call.1} parent=11 // pred_region
          _
        $region16: #{tpu_custom_call.1} parent=11 // pred_fallthru
          _
        // Predicated region
        $region17: #{tpu_custom_call.1} parent=11 // pred_check
          %p121 = pneg %p51
        $region18: #{tpu_custom_call.1} parent=11 // pred_check_branch
          %123 = sbr.rel (%p121) target = $region20
        $region19: #{tpu_custom_call.1} parent=11 // pred_region
          _
        $region20: #{tpu_custom_call.1} parent=11 // pred_fallthru
          _
      $region12: #{tpu_custom_call.1} parent=5 // pred_fallthru
        _
      %p124 = scmp.lt.s32.totalorder %s9, 5
      // Predicated region
      $region21: #{tpu_custom_call.1} parent=5 // pred_check
        %p125 = pneg %p124
      $region22: #{tpu_custom_call.1} parent=5 // pred_check_branch
        %127 = sbr.rel (%p125) target = $region24
      $region23: #{tpu_custom_call.1} parent=5 // pred_region
        // Predicated region
        $region25: #{tpu_custom_call.1} parent=23 // pred_check
          %p128 = pneg %p71
        $region26: #{tpu_custom_call.1} parent=23 // pred_check_branch
          %130 = sbr.rel (%p128) target = $region28
        $region27: #{tpu_custom_call.1} parent=23 // pred_region
          %s131 = smul.u32 8, %s9
          %s132 = ssub.s32 33, %s131
          %p133 = scmp.lt.s32.totalorder %s132, 8
          %s134 = scalar_select %p133, %s132, 8
          %s135 = smul.u32 128, %s134
          %p136 = scmp.lt.s32.totalorder %s131, 32
          %s137 = scalar_select %p136, %s131, 32
          %s138 = smul.addr %s137, 8
          %s139 = scalar_lea.vmem %s2, %s138
          %s140 = smul.u32 8, %s9
          %s141 = ssub.s32 33, %s140
          %p142 = scmp.lt.s32.totalorder %s141, 8
          %s143 = scalar_select %p142, %s141, 8
          %s144 = smul.u32 128, %s143
        $region28: #{tpu_custom_call.1} parent=23 // pred_fallthru
          _
      $region24: #{tpu_custom_call.1} parent=5 // pred_fallthru
        _
      %p145 = scmp.le.s32.totalorder 1, %s9
      %p146 = scmp.lt.s32.totalorder %s9, 6
      %p147 = pnand %p145, %p146
      %p148 = pneg %p147
      // Predicated region
      $region29: #{tpu_custom_call.1} parent=5 // pred_check
        _
      $region30: #{tpu_custom_call.1} parent=5 // pred_check_branch
        %150 = sbr.rel (%p147) target = $region32
      $region31: #{tpu_custom_call.1} parent=5 // pred_region
        %s151 = ssub.s32 %s9, 1
        %p152 = pneg %p30
        %p153 = pneg %p27
        %p154 = pneg %p51
        %p155 = pneg %p48
        %s156 = smul.u32 8, %s14
        %s157 = ssub.s32 33, %s156
        %p158 = scmp.lt.s32.totalorder %s157, 8
        %s159 = scalar_select %p158, %s157, 8
        %s160 = smul.u32 128, %s159
        %p161 = scmp.lt.s32.totalorder %s156, 32
        %s162 = scalar_select %p161, %s156, 32
        %s163 = smul.addr %s162, 8
        %s164 = scalar_lea.vmem %s2, %s163
        %p165 = pneg %p77
        %p166 = pneg %p74
        %p167 = pneg %p103
        %p168 = pneg %p100
        %s169 = sand.u32 %s90, 1
        %s170 = sand.u32 %s90, 1
        %s171 = smul.addr %s170, 64
        %s172 = scalar_lea.vmem [#allocation2], %s171
        %s173 = smul.u32 8, %s14
        %s174 = ssub.s32 33, %s173
        %p175 = scmp.lt.s32.totalorder %s174, 8
        %s176 = scalar_select %p175, %s174, 8
        %s177 = smul.u32 128, %s176
        %p178 = scmp.lt.s32.totalorder %s173, 32
        %s179 = scalar_select %p178, %s173, 32
        %s180 = smul.addr %s179, 8
        %s181 = scalar_lea.vmem %s2, %s180
        %s182 = smul.u32 8, %s14
        %s183 = ssub.s32 33, %s182
        %p184 = scmp.lt.s32.totalorder %s183, 8
        %s185 = scalar_select %p184, %s183, 8
        %s186 = smul.u32 128, %s185
        %s187 = smul.u32 8, %s14
        %s188 = ssub.s32 33, %s187
        %p189 = scmp.lt.s32.totalorder %s188, 8
        %s190 = scalar_select %p189, %s188, 8
        %s191 = smul.u32 128, %s190
        %v192 = vld [vmem:[%s181] sm:$0xff]
        %v193 = vld [vmem:[%s181 + $0x8] sm:$0xff]
        %v194 = vld [vmem:[%s181 + $0x10] sm:$0xff]
        %v195 = vld [vmem:[%s181 + $0x18] sm:$0xff]
        %v196 = vld [vmem:[%s181 + $0x20] sm:$0xff]
        %v197 = vld [vmem:[%s181 + $0x28] sm:$0xff]
        %v198 = vld [vmem:[%s181 + $0x30] sm:$0xff]
        %v199 = vld [vmem:[%s181 + $0x38] sm:$0xff]
        %v200 = vld [vmem:[%s0] sm:$0xff]
        %v201 = vld [vmem:[%s0 + $0x8] sm:$0xff]
        %v202 = vld [vmem:[%s0 + $0x10] sm:$0xff]
        %v203 = vld [vmem:[%s0 + $0x18] sm:$0xff]
        %v204 = vld [vmem:[%s0 + $0x20] sm:$0xff]
        %v205 = vld [vmem:[%s1] sm:$0x1]
        %v207 = vlaneseq
        %v208 = vshrl.u32 %v207, 7
        %v209 = vsub.s32 0, %v208
        %v210 = vrot.slane %v205, %v209
        %vm212 = vcmask 326656
        %v214 = vsel %vm212, %v192, 0
        %v217 = vsel %vm212, %v193, 0
        %v220 = vsel %vm212, %v194, 0
        %v223 = vsel %vm212, %v195, 0
        %v226 = vsel %vm212, %v196, 0
        %v229 = vsel %vm212, %v197, 0
        %v232 = vsel %vm212, %v198, 0
        %v235 = vsel %vm212, %v199, 0
        %237 = vmatprep.subr.mxu0 0.0
        %238 = vmatpush1.msra.mxu0 0.0
        %239 = vmatprep.subr.mxu0 0.0
        %240 = vmatpush1.msra.mxu0 0.0
        %241 = vmatprep.subr.mxu0 0.0
        %242 = vmatpush1.msra.mxu0 0.0
        %243 = vmatprep.subr.mxu0 0.0
        %244 = vmatpush1.msra.mxu0 0.0
        %245 = vmatprep.subr.mxu0 0.0
        %246 = vmatpush1.msra.mxu0 0.0
        %247 = vmatprep.subr.mxu0 0.0
        %248 = vmatpush1.msra.mxu0 0.0
        %249 = vmatprep.subr.mxu0 0.0
        %250 = vmatpush1.msra.mxu0 0.0
        %251 = vmatprep.subr.mxu0 0.0
        %252 = vmatpush1.msra.mxu0 0.0
        %253 = vmatprep.subr.mxu0 0.0
        %254 = vmatpush1.msra.mxu0 0.0
        %255 = vmatprep.subr.mxu0 0.0
        %256 = vmatpush1.msra.mxu0 0.0
        %257 = vmatprep.subr.mxu0 0.0
        %258 = vmatpush1.msra.mxu0 0.0
        %259 = vmatprep.subr.mxu0 0.0
        %260 = vmatpush1.msra.mxu0 %v204
        %261 = vmatprep.subr.mxu0 0.0
        %262 = vmatpush1.msra.mxu0 %v203
        %263 = vmatprep.subr.mxu0 0.0
        %264 = vmatpush1.msra.mxu0 %v202
        %265 = vmatprep.subr.mxu0 0.0
        %266 = vmatpush1.msra.mxu0 %v201
        %267 = vmatprep.subr.mxu0 0.0
        %268 = vmatpush1.msra.mxu0 %v200
        %269 = vmatprep.subr.mxu0 0.0
        %270 = vmatpush2.msra.mxu0 0.0
        %271 = vmatprep.subr.mxu0 0.0
        %272 = vmatpush2.msra.mxu0 0.0
        %273 = vmatprep.subr.mxu0 0.0
        %274 = vmatpush2.msra.mxu0 0.0
        %275 = vmatprep.subr.mxu0 0.0
        %276 = vmatpush2.msra.mxu0 0.0
        %277 = vmatprep.subr.mxu0 0.0
        %278 = vmatpush2.msra.mxu0 0.0
        %279 = vmatprep.subr.mxu0 0.0
        %280 = vmatpush2.msra.mxu0 0.0
        %281 = vmatprep.subr.mxu0 0.0
        %282 = vmatpush2.msra.mxu0 0.0
        %283 = vmatprep.subr.mxu0 0.0
        %284 = vmatpush2.msra.mxu0 0.0
        %285 = vmatprep.subr.mxu0 0.0
        %286 = vmatpush2.msra.mxu0 0.0
        %287 = vmatprep.subr.mxu0 0.0
        %288 = vmatpush2.msra.mxu0 0.0
        %289 = vmatprep.subr.mxu0 0.0
        %290 = vmatpush2.msra.mxu0 0.0
        %291 = vmatprep.subr.mxu0 0.0
        %292 = vmatpush2.msra.mxu0 0.0
        %293 = vmatprep.subr.mxu0 0.0
        %294 = vmatpush2.msra.mxu0 0.0
        %295 = vmatprep.subr.mxu0 0.0
        %296 = vmatpush2.msra.mxu0 0.0
        %297 = vmatprep.subr.mxu0 0.0
        %298 = vmatpush2.msra.mxu0 0.0
        %299 = vmatprep.subr.mxu0 0.0
        %300 = vmatpush2.msra.mxu0 0.0
        %301 = vmatprep.mubr.f32.mxu0 0.0
        %302 = vmatmul.mubr.f32.gmra.mxu0 %v214
        %v303 = vpop.f32.mrf.mxu0
        %v304 = vadd.f32 %v210, %v303
        %v305 = vpop.f32.mrf.mxu0
        %306 = vmatprep.mubr.f32.mxu0 0.0
        %307 = vmatmul.mubr.f32.gmra.mxu0 %v217
        %v308 = vpop.f32.mrf.mxu0
        %v309 = vadd.f32 %v210, %v308
        %v310 = vpop.f32.mrf.mxu0
        %311 = vmatprep.mubr.f32.mxu0 0.0
        %312 = vmatmul.mubr.f32.gmra.mxu0 %v220
        %v313 = vpop.f32.mrf.mxu0
        %v314 = vadd.f32 %v210, %v313
        %v315 = vpop.f32.mrf.mxu0
        %316 = vmatprep.mubr.f32.mxu0 0.0
        %317 = vmatmul.mubr.f32.gmra.mxu0 %v223
        %v318 = vpop.f32.mrf.mxu0
        %v319 = vadd.f32 %v210, %v318
        %v320 = vpop.f32.mrf.mxu0
        %321 = vmatprep.mubr.f32.mxu0 0.0
        %322 = vmatmul.mubr.f32.gmra.mxu0 %v226
        %v323 = vpop.f32.mrf.mxu0
        %v324 = vadd.f32 %v210, %v323
        %v325 = vpop.f32.mrf.mxu0
        %326 = vmatprep.mubr.f32.mxu0 0.0
        %327 = vmatmul.mubr.f32.gmra.mxu0 %v229
        %v328 = vpop.f32.mrf.mxu0
        %v329 = vadd.f32 %v210, %v328
        %v330 = vpop.f32.mrf.mxu0
        %331 = vmatprep.mubr.f32.mxu0 0.0
        %332 = vmatmul.mubr.f32.gmra.mxu0 %v232
        %v333 = vpop.f32.mrf.mxu0
        %v334 = vadd.f32 %v210, %v333
        %v335 = vpop.f32.mrf.mxu0
        %336 = vmatprep.mubr.f32.mxu0 0.0
        %337 = vmatmul.mubr.f32.gmra.mxu0 %v235
        %v338 = vpop.f32.mrf.mxu0
        %v339 = vadd.f32 %v210, %v338
        %v340 = vpop.f32.mrf.mxu0
        %341 = vdwg.mxu0
        %vm342 = vcmask 130048
        %343 = vst.msk [vmem:[%s172] sm:$0xff] %vm342, %v304
        %344 = vst.msk [vmem:[%s172 + $0x8] sm:$0xff] %vm342, %v309
        %345 = vst.msk [vmem:[%s172 + $0x10] sm:$0xff] %vm342, %v314
        %346 = vst.msk [vmem:[%s172 + $0x18] sm:$0xff] %vm342, %v319
        %347 = vst.msk [vmem:[%s172 + $0x20] sm:$0xff] %vm342, %v324
        %348 = vst.msk [vmem:[%s172 + $0x28] sm:$0xff] %vm342, %v329
        %349 = vst.msk [vmem:[%s172 + $0x30] sm:$0xff] %vm342, %v334
        %350 = vst.msk [vmem:[%s172 + $0x38] sm:$0xff] %vm342, %v339
        %s351 = sand.u32 %s90, 1
        %s352 = sand.u32 %s90, 1
        %s353 = smul.addr %s352, 64
        %s354 = scalar_lea.vmem [#allocation2], %s353
        // Predicated region
        $region33: #{tpu_custom_call.1} parent=31 // pred_check
          %p355 = pneg %p100
        $region34: #{tpu_custom_call.1} parent=31 // pred_check_branch
          %357 = sbr.rel (%p355) target = $region36
        $region35: #{tpu_custom_call.1} parent=31 // pred_region
          %s358 = smul.u32 8, %s14
          %s359 = ssub.s32 33, %s358
          %p360 = scmp.lt.s32.totalorder %s359, 8
          %s361 = scalar_select %p360, %s359, 8
          %s362 = smul.u32 128, %s361
          %p363 = scmp.ne.s32.totalorder 0, %s362
          %s364 = smul.addr %s358, 8
          %s365 = scalar_lea.vmem %s3, %s364
          // Predicated region
          $region37: #{tpu_custom_call.1} parent=35 // pred_check
            %p366 = pneg %p363
          $region38: #{tpu_custom_call.1} parent=35 // pred_check_branch
            %368 = sbr.rel (%p366) target = $region40
          $region39: #{tpu_custom_call.1} parent=35 // pred_region
            // Predicated region
            $region41: #{tpu_custom_call.1} parent=39 // pred_check
              _
            $region42: #{tpu_custom_call.1} parent=39 // pred_check_branch
              %370 = sbr.rel (0) target = $region44
            $region43: #{tpu_custom_call.1} parent=39 // pred_region
              // Predicated region
              $region63: #{tpu_custom_call.1} parent=43 // pred_check
                _
              $region64: #{tpu_custom_call.1} parent=43 // pred_check_branch
                %434 = sbr.rel (0) target = $region66
              $region65: #{tpu_custom_call.1} parent=43 // pred_region
                %s435 = sshrl.u32 %s361, 3
                // While loop
                $region67: #{tpu_custom_call.1} parent=65 // loop_pre_header
                  _
                $region68: #{tpu_custom_call.1} parent=65 // loop_header
                  %s437 = sphi 0, %s439
                  %p438 = scmp.ge.s32.totalorder %s437, %s435
                  %s442 = sphi 0, %s463
                  %s443 = sphi %s354, %s466
                  %s444 = sphi %s365, %s467
                $region69: #{tpu_custom_call.1} parent=65 // loop_header_branch
                  %441 = sbr.rel (%p438) target = $region73
                $region70: #{tpu_custom_call.1} parent=65 // loop_body
                  %v445 = vld [vmem:[%s443] sm:$0xff]
                  %446 = vst [vmem:[%s444] sm:$0xff] %v445
                  %v447 = vld [vmem:[%s443 + $0x8] sm:$0xff]
                  %448 = vst [vmem:[%s444 + $0x8] sm:$0xff] %v447
                  %v449 = vld [vmem:[%s443 + $0x10] sm:$0xff]
                  %450 = vst [vmem:[%s444 + $0x10] sm:$0xff] %v449
                  %v451 = vld [vmem:[%s443 + $0x18] sm:$0xff]
                  %452 = vst [vmem:[%s444 + $0x18] sm:$0xff] %v451
                  %v453 = vld [vmem:[%s443 + $0x20] sm:$0xff]
                  %454 = vst [vmem:[%s444 + $0x20] sm:$0xff] %v453
                  %v455 = vld [vmem:[%s443 + $0x28] sm:$0xff]
                  %456 = vst [vmem:[%s444 + $0x28] sm:$0xff] %v455
                  %v457 = vld [vmem:[%s443 + $0x30] sm:$0xff]
                  %458 = vst [vmem:[%s444 + $0x30] sm:$0xff] %v457
                  %v459 = vld [vmem:[%s443 + $0x38] sm:$0xff]
                  %460 = vst [vmem:[%s444 + $0x38] sm:$0xff] %v459
                  %s461 = sadd.s32 1, %s442
                  %p462 = scmp.ge.s32.totalorder %s461, %s435
                  %s463 = scalar_select %p462, 0, %s461
                  %s464 = smul.u32 %s463, 64
                  %s465 = smul.u32 %s463, 64
                  %s466 = scalar_lea.vmem %s354, %s464 [#allocation2]
                  %s467 = scalar_lea.vmem %s365, %s465
                $region71: #{tpu_custom_call.1} parent=65 // loop_footer
                  %s439 = sadd.s32 %s437, 1
                $region72: #{tpu_custom_call.1} parent=65 // loop_footer_branch
                  %436 = sbr.rel target = $region68
                $region73: #{tpu_custom_call.1} parent=65 // loop_exit
                  _
                %s468 = sshrl.u32 %s361, 3
                %s469 = sand.u32 %s361, 7
                %s470 = smul.u32 %s468, 8
                %s471 = smul.u32 8, %s470
                %s472 = scalar_lea.vmem %s354, %s471 [#allocation2]
                %s473 = smul.u32 8, %s470
                %s474 = scalar_lea.vmem %s365, %s473
                // While loop
                $region74: #{tpu_custom_call.1} parent=65 // loop_pre_header
                  _
                $region75: #{tpu_custom_call.1} parent=65 // loop_header
                  %s476 = sphi 0, %s478
                  %p477 = scmp.ge.s32.totalorder %s476, %s469
                  %s481 = sphi 0, %s488
                  %s482 = sphi %s472, %s491
                  %s483 = sphi %s474, %s492
                $region76: #{tpu_custom_call.1} parent=65 // loop_header_branch
                  %480 = sbr.rel (%p477) target = $region80
                $region77: #{tpu_custom_call.1} parent=65 // loop_body
                  %v484 = vld [vmem:[%s482] sm:$0xff]
                  %485 = vst [vmem:[%s483] sm:$0xff] %v484
                  %s486 = sadd.s32 1, %s481
                  %p487 = scmp.ge.s32.totalorder %s486, %s469
                  %s488 = scalar_select %p487, 0, %s486
                  %s489 = smul.u32 %s488, 8
                  %s490 = smul.u32 %s488, 8
                  %s491 = scalar_lea.vmem %s472, %s489 [#allocation2]
                  %s492 = scalar_lea.vmem %s474, %s490
                $region78: #{tpu_custom_call.1} parent=65 // loop_footer
                  %s478 = sadd.s32 %s476, 1
                $region79: #{tpu_custom_call.1} parent=65 // loop_footer_branch
                  %475 = sbr.rel target = $region75
                $region80: #{tpu_custom_call.1} parent=65 // loop_exit
                  _
              $region66: #{tpu_custom_call.1} parent=43 // pred_fallthru
                _
              // Predicated region
              $region81: #{tpu_custom_call.1} parent=43 // pred_check
                _
              $region82: #{tpu_custom_call.1} parent=43 // pred_check_branch
                %494 = sbr.rel target = $region84
              $region83: #{tpu_custom_call.1} parent=43 // pred_region
                _
              $region84: #{tpu_custom_call.1} parent=43 // pred_fallthru
                _
            $region44: #{tpu_custom_call.1} parent=39 // pred_fallthru
              _
            // Predicated region
            $region45: #{tpu_custom_call.1} parent=39 // pred_check
              _
            $region46: #{tpu_custom_call.1} parent=39 // pred_check_branch
              %372 = sbr.rel target = $region48
            $region47: #{tpu_custom_call.1} parent=39 // pred_region
              %s374 = ssub.s32 256, 1
              %s375 = sshrl.u32 %s361, 3
              // While loop
              $region49: #{tpu_custom_call.1} parent=47 // loop_pre_header
                _
              $region50: #{tpu_custom_call.1} parent=47 // loop_header
                %s377 = sphi 0, %s379
                %p378 = scmp.ge.s32.totalorder %s377, %s375
                %s382 = sphi 0, %s403
                %s383 = sphi %s354, %s406
                %s384 = sphi %s365, %s407
              $region51: #{tpu_custom_call.1} parent=47 // loop_header_branch
                %381 = sbr.rel (%p378) target = $region55
              $region52: #{tpu_custom_call.1} parent=47 // loop_body
                %v385 = vld [vmem:[%s383] sm:%s374]
                %386 = vst [vmem:[%s384] sm:%s374] %v385
                %v387 = vld [vmem:[%s383 + $0x8] sm:%s374]
                %388 = vst [vmem:[%s384 + $0x8] sm:%s374] %v387
                %v389 = vld [vmem:[%s383 + $0x10] sm:%s374]
                %390 = vst [vmem:[%s384 + $0x10] sm:%s374] %v389
                %v391 = vld [vmem:[%s383 + $0x18] sm:%s374]
                %392 = vst [vmem:[%s384 + $0x18] sm:%s374] %v391
                %v393 = vld [vmem:[%s383 + $0x20] sm:%s374]
                %394 = vst [vmem:[%s384 + $0x20] sm:%s374] %v393
                %v395 = vld [vmem:[%s383 + $0x28] sm:%s374]
                %396 = vst [vmem:[%s384 + $0x28] sm:%s374] %v395
                %v397 = vld [vmem:[%s383 + $0x30] sm:%s374]
                %398 = vst [vmem:[%s384 + $0x30] sm:%s374] %v397
                %v399 = vld [vmem:[%s383 + $0x38] sm:%s374]
                %400 = vst [vmem:[%s384 + $0x38] sm:%s374] %v399
                %s401 = sadd.s32 1, %s382
                %p402 = scmp.ge.s32.totalorder %s401, %s375
                %s403 = scalar_select %p402, 0, %s401
                %s404 = smul.u32 %s403, 64
                %s405 = smul.u32 %s403, 64
                %s406 = scalar_lea.vmem %s354, %s404 [#allocation2]
                %s407 = scalar_lea.vmem %s365, %s405
              $region53: #{tpu_custom_call.1} parent=47 // loop_footer
                %s379 = sadd.s32 %s377, 1
              $region54: #{tpu_custom_call.1} parent=47 // loop_footer_branch
                %376 = sbr.rel target = $region50
              $region55: #{tpu_custom_call.1} parent=47 // loop_exit
                _
              %s408 = sshrl.u32 %s361, 3
              %s409 = sand.u32 %s361, 7
              %s410 = smul.u32 %s408, 8
              %s411 = smul.u32 8, %s410
              %s412 = scalar_lea.vmem %s354, %s411 [#allocation2]
              %s413 = smul.u32 8, %s410
              %s414 = scalar_lea.vmem %s365, %s413
              // While loop
              $region56: #{tpu_custom_call.1} parent=47 // loop_pre_header
                _
              $region57: #{tpu_custom_call.1} parent=47 // loop_header
                %s416 = sphi 0, %s418
                %p417 = scmp.ge.s32.totalorder %s416, %s409
                %s421 = sphi 0, %s428
                %s422 = sphi %s412, %s431
                %s423 = sphi %s414, %s432
              $region58: #{tpu_custom_call.1} parent=47 // loop_header_branch
                %420 = sbr.rel (%p417) target = $region62
              $region59: #{tpu_custom_call.1} parent=47 // loop_body
                %v424 = vld [vmem:[%s422] sm:%s374]
                %425 = vst [vmem:[%s423] sm:%s374] %v424
                %s426 = sadd.s32 1, %s421
                %p427 = scmp.ge.s32.totalorder %s426, %s409
                %s428 = scalar_select %p427, 0, %s426
                %s429 = smul.u32 %s428, 8
                %s430 = smul.u32 %s428, 8
                %s431 = scalar_lea.vmem %s412, %s429 [#allocation2]
                %s432 = scalar_lea.vmem %s414, %s430
              $region60: #{tpu_custom_call.1} parent=47 // loop_footer
                %s418 = sadd.s32 %s416, 1
              $region61: #{tpu_custom_call.1} parent=47 // loop_footer_branch
                %415 = sbr.rel target = $region57
              $region62: #{tpu_custom_call.1} parent=47 // loop_exit
                _
            $region48: #{tpu_custom_call.1} parent=39 // pred_fallthru
              _
          $region40: #{tpu_custom_call.1} parent=35 // pred_fallthru
            _
          %495 = vnop
        $region36: #{tpu_custom_call.1} parent=31 // pred_fallthru
          _
      $region32: #{tpu_custom_call.1} parent=5 // pred_fallthru
        _
      %p496 = scmp.le.s32.totalorder 2, %s9
      // Predicated region
      $region85: #{tpu_custom_call.1} parent=5 // pred_check
        %p497 = pneg %p496
      $region86: #{tpu_custom_call.1} parent=5 // pred_check_branch
        %499 = sbr.rel (%p497) target = $region88
      $region87: #{tpu_custom_call.1} parent=5 // pred_region
        %s500 = ssub.s32 %s9, 2
        // Predicated region
        $region89: #{tpu_custom_call.1} parent=87 // pred_check
          %p501 = pneg %p106
        $region90: #{tpu_custom_call.1} parent=87 // pred_check_branch
          %503 = sbr.rel (%p501) target = $region92
        $region91: #{tpu_custom_call.1} parent=87 // pred_region
          %s504 = sand.u32 %s91, 1
          %s505 = sand.u32 %s91, 1
          %s506 = smul.addr %s505, 64
          %s507 = scalar_lea.vmem [#allocation2], %s506
        $region92: #{tpu_custom_call.1} parent=87 // pred_fallthru
          _
      $region88: #{tpu_custom_call.1} parent=5 // pred_fallthru
        _
    $region6: #{tpu_custom_call.1} parent=1 // loop_footer
      %s13 = sadd.s32 1, %s9
    $region7: #{tpu_custom_call.1} parent=1 // loop_footer_branch
      %8 = sbr.rel target = $region3
    $region8: #{tpu_custom_call.1} parent=1 // loop_exit
      _

</llo_original>
